<compile_context>
chip_gen: v6e
topology: v6e:2x2x1
jax: 0.10.0
libtpu: 0.0.40
codegen_flags: <defaults>
</compile_context>

<pallas_src>
import functools

import jax
import jax.numpy as jnp
from jax.experimental import pallas as pl
from jax.experimental.pallas import tpu as pltpu


_SQRT_HALF = 0.7071067811865476


def _erf_approx(x):
    """Abramowitz & Stegun 7.1.26 erf, |err| < 1.5e-7; uses only exp (EUP)."""
    a1, a2, a3, a4, a5 = (0.254829592, -0.284496736, 1.421413741,
                          -1.453152027, 1.061405429)
    p = 0.3275911
    ax = jnp.abs(x)
    # NOTE: pl.reciprocal(1 + p*ax, approx=True) would push this divide onto
    # the EUP slot, but the approximate rcp error would dominate the 1.5e-7
    # polynomial error and endanger the 2e-5 tolerance; keep the exact divide.
    t = 1.0 / (1.0 + p * ax)
    poly = ((((a5 * t + a4) * t + a3) * t + a2) * t + a1) * t
    y = 1.0 - poly * jnp.exp(-ax * ax)
    return jnp.where(x >= 0, y, -y)


def _gelu_exact(x):
    return 0.5 * x * (1.0 + _erf_approx(x * _SQRT_HALF))


# ------------------------------- fused kernel ------------------------------ #

def _gdfn_kernel(x_ref, w_in_ref, b_in_ref, w_dw_ref, b_dw_ref,
                 w_out_ref, b_out_ref, masks_ref, o_ref, *, W, HD, use_mxu):
    """Whole-image GDFN for one batch element, spatial flattened on lanes.

    x_ref     : (1, C, HW)   input image, lane-dense spatial
    w_in_ref  : (HD2, C)     project_in weight
    b_in_ref  : (HD2, 1)
    w_dw_ref  : (HD2, 9)     depthwise 3x3 taps, tap index = ky*3 + kx
    b_dw_ref  : (HD2, 1)
    w_out_ref : (C, HD)      project_out weight
    b_out_ref : (C, 1)
    masks_ref : (4, HW)      [row_ok(dy=-1), row_ok(+1), col_ok(dx=-1), col_ok(+1)]
    o_ref     : (1, C, HW)
    """
    C = x_ref.shape[1]
    HW = x_ref.shape[2]
    HD2 = 2 * HD

    x = x_ref[0].astype(jnp.float32)                      # (C, HW)
    b_in = b_in_ref[...].astype(jnp.float32)              # (HD2, 1)
    b_dw = b_dw_ref[...].astype(jnp.float32)              # (HD2, 1)
    b_out = b_out_ref[...].astype(jnp.float32)            # (C, 1)
    masks = masks_ref[...].astype(jnp.float32)            # (4, HW)
    row_ok = {-1: masks[0:1, :], 1: masks[1:2, :]}
    col_ok = {-1: masks[2:3, :], 1: masks[3:4, :]}

    # -- project_in (1x1 conv): (HD2, C) @ (C, HW) + b_in ---------------------
    if use_mxu:
        y = jnp.dot(w_in_ref[...].astype(jnp.bfloat16), x.astype(jnp.bfloat16),
                    preferred_element_type=jnp.float32) + b_in
    else:
        w_in = w_in_ref[...].astype(jnp.float32)
        y = jnp.broadcast_to(b_in, (HD2, HW))
        for c in range(C):                                 # tiny toy-size unroll
            y = y + w_in[:, c:c + 1] * x[c:c + 1, :]

    # -- depthwise 3x3 conv (stride 1, pad 1) via lane rolls + boundary masks -
    w_dw = w_dw_ref[...].astype(jnp.float32)               # (HD2, 9)
    z = jnp.broadcast_to(b_dw, (HD2, HW))
    for ky in range(3):
        dy = ky - 1
        if dy == 0:
            y_row = y
        else:
            y_row = pltpu.roll(y, shift=(-dy * W) % HW, axis=1) * row_ok[dy]
        for kx in range(3):
            dx = kx - 1
            if dx == 0:
                contrib = y_row
            else:
                contrib = pltpu.roll(y_row, shift=(-dx) % HW, axis=1) * col_ok[dx]
            tap = ky * 3 + kx
            z = z + w_dw[:, tap:tap + 1] * contrib

    # -- gated GELU: gelu(z1) * z2 --------------------------------------------
    g = _gelu_exact(z[:HD]) * z[HD:]                        # (HD, HW)

    # -- project_out (1x1 conv): (C, HD) @ (HD, HW) + b_out -------------------
    if use_mxu:
        out = jnp.dot(w_out_ref[...].astype(jnp.bfloat16), g.astype(jnp.bfloat16),
                      preferred_element_type=jnp.float32) + b_out
    else:
        w_out = w_out_ref[...].astype(jnp.float32)
        out = jnp.broadcast_to(b_out, (C, HW))
        for h in range(HD):
            out = out + w_out[:, h:h + 1] * g[h:h + 1, :]

    o_ref[0] = out.astype(o_ref.dtype)


# --------------------------------- wrapper --------------------------------- #

def feedforward_forward(x_nchw, params):
    """FeedForward forward pass. Input/output NCHW, same as the PyTorch module."""
    N, C, H, W = x_nchw.shape
    hd2 = params["w_in"].shape[0]
    hd = params["w_out"].shape[1]
    assert hd2 == 2 * hd
    HW = H * W
    assert HW % 128 == 0, "flattened spatial must be lane-dense (multiple of 128)"

    # MXU only pays off at production channel counts; keep exact f32 FMAs at
    # the toy dim=4 / hidden=8 size.
    use_mxu = min(C, hd) >= 16

    # compact 2-D kernel-side layouts (no (...,1,1) VMEM tile padding)
    w_in_k = params["w_in"][:, :, 0, 0]                       # (HD2, C)
    b_in_k = params["b_in"][:, None]                          # (HD2, 1)
    w_dw_k = params["w_dw"].reshape(hd2, 9)                   # (HD2, 9), tap = ky*3+kx
    b_dw_k = params["b_dw"][:, None]                          # (HD2, 1)
    w_out_k = params["w_out"][:, :, 0, 0]                     # (C, HD)
    b_out_k = params["b_out"][:, None]                        # (C, 1)

    # precomputed boundary masks for the flattened 3x3 conv (zero padding)
    hh = jnp.arange(H, dtype=jnp.int32)[:, None]
    ww = jnp.arange(W, dtype=jnp.int32)[None, :]
    def _row_ok(dy):
        return jnp.broadcast_to((hh + dy >= 0) & (hh + dy < H), (H, W))
    def _col_ok(dx):
        return jnp.broadcast_to((ww + dx >= 0) & (ww + dx < W), (H, W))
    masks = jnp.stack([_row_ok(-1), _row_ok(1), _col_ok(-1), _col_ok(1)]
                      ).astype(jnp.float32).reshape(4, HW)

    x_flat = x_nchw.reshape(N, C, HW)

    const = dict(pipeline_mode=pl.Buffered(1))   # constant block index -> single buffer
    kernel = functools.partial(_gdfn_kernel, W=W, HD=hd, use_mxu=use_mxu)

    out_flat = pl.pallas_call(
        kernel,
        out_shape=jax.ShapeDtypeStruct((N, C, HW), x_nchw.dtype),
        grid=(N,),
        in_specs=[
            pl.BlockSpec((1, C, HW), lambda n: (n, 0, 0)),
            pl.BlockSpec((hd2, C), lambda n: (0, 0), **const),
            pl.BlockSpec((hd2, 1), lambda n: (0, 0), **const),
            pl.BlockSpec((hd2, 9), lambda n: (0, 0), **const),
            pl.BlockSpec((hd2, 1), lambda n: (0, 0), **const),
            pl.BlockSpec((C, hd), lambda n: (0, 0), **const),
            pl.BlockSpec((C, 1), lambda n: (0, 0), **const),
            pl.BlockSpec((4, HW), lambda n: (0, 0), **const),
        ],
        out_specs=pl.BlockSpec((1, C, HW), lambda n: (n, 0, 0)),
        compiler_params=pltpu.CompilerParams(
            dimension_semantics=("parallel",),      # batch-only megacore sharding
            vmem_limit_bytes=32 * 1024 * 1024),
    )(x_flat, w_in_k, b_in_k, w_dw_k, b_dw_k, w_out_k, b_out_k, masks)

    return out_flat.reshape(N, C, H, W)


# ---------------------------- pure-JAX reference ---------------------------- #

def feedforward_reference(x, params):
    dn = ("NCHW", "OIHW", "NCHW")
    hd2 = params["w_in"].shape[0]
    y = jax.lax.conv_general_dilated(x, params["w_in"], (1, 1), "VALID",
                                     dimension_numbers=dn)
    y = y + params["b_in"][None, :, None, None]
    z = jax.lax.conv_general_dilated(y, params["w_dw"], (1, 1), "SAME",
                                     dimension_numbers=dn,
                                     feature_group_count=hd2)
    z = z + params["b_dw"][None, :, None, None]
    z1, z2 = jnp.split(z, 2, axis=1)
    g = jax.nn.gelu(z1, approximate=False) * z2
    out = jax.lax.conv_general_dilated(g, params["w_out"], (1, 1), "VALID",
                                       dimension_numbers=dn)
    return out + params["b_out"][None, :, None, None]


# ----------------------------------- main ----------------------------------- #

if __name__ == "__main__":
    N, dim, H, W = 2, 4, 16, 16
    ffn_expansion_factor = 2
    hidden = int(dim * ffn_expansion_factor)      # 8
    hd2 = hidden * 2                              # 16

    key = jax.random.PRNGKey(0)
    ks = jax.random.split(key, 7)
    x = jax.random.normal(ks[0], (N, dim, H, W), jnp.float32)

    # shapes mirror the PyTorch module's parameters (bias=True)
    params = {
        "w_in":  0.2 * jax.random.normal(ks[1], (hd2, dim, 1, 1), jnp.float32),
        "b_in":  0.1 * jax.random.normal(ks[2], (hd2,), jnp.float32),
        "w_dw":  0.2 * jax.random.normal(ks[3], (hd2, 1, 3, 3), jnp.float32),
        "b_dw":  0.1 * jax.random.normal(ks[4], (hd2,), jnp.float32),
        "w_out": 0.2 * jax.random.normal(ks[5], (dim, hidden, 1, 1), jnp.float32),
        "b_out": 0.1 * jax.random.normal(ks[6], (dim,), jnp.float32),
    }

    out = jax.block_until_ready(feedforward_forward(x, params))
    ref = jax.block_until_ready(feedforward_reference(x, params))

    assert out.shape == (N, dim, H, W)
    max_err = float(jnp.max(jnp.abs(out - ref)))
    assert jnp.allclose(out, ref, rtol=2e-5, atol=2e-5), f"max abs err {max_err}"

    print("KERNEL_OK")
</pallas_src>

<mosaic_0001>
module attributes {stable_mosaic.version = 11 : i64} {
  func.func @_gdfn_kernel(%arg0: i32, %arg1: memref<1x4x256xf32, #tpu.memory_space<vmem>>, %arg2: memref<16x4xf32, #tpu.memory_space<vmem>>, %arg3: memref<16x1xf32, #tpu.memory_space<vmem>>, %arg4: memref<16x9xf32, #tpu.memory_space<vmem>>, %arg5: memref<16x1xf32, #tpu.memory_space<vmem>>, %arg6: memref<4x8xf32, #tpu.memory_space<vmem>>, %arg7: memref<4x1xf32, #tpu.memory_space<vmem>>, %arg8: memref<4x256xf32, #tpu.memory_space<vmem>>, %arg9: memref<1x4x256xf32, #tpu.memory_space<vmem>>) attributes {dimension_semantics = [#tpu.dimension_semantics<parallel>], iteration_bounds = array<i64: 2>, scalar_prefetch = 0 : i64, scratch_operands = 0 : i64, tpu.core_type = #tpu.core_type<tc>, window_params = [{transform_indices = @transform_0, window_bounds = array<i64: 1, 4, 256>}, {pipeline_mode = #tpu.pipeline_mode<synchronous>, transform_indices = @transform_1, window_bounds = array<i64: 16, 4>}, {pipeline_mode = #tpu.pipeline_mode<synchronous>, transform_indices = @transform_2, window_bounds = array<i64: 16, 1>}, {pipeline_mode = #tpu.pipeline_mode<synchronous>, transform_indices = @transform_3, window_bounds = array<i64: 16, 9>}, {pipeline_mode = #tpu.pipeline_mode<synchronous>, transform_indices = @transform_4, window_bounds = array<i64: 16, 1>}, {pipeline_mode = #tpu.pipeline_mode<synchronous>, transform_indices = @transform_5, window_bounds = array<i64: 4, 8>}, {pipeline_mode = #tpu.pipeline_mode<synchronous>, transform_indices = @transform_6, window_bounds = array<i64: 4, 1>}, {pipeline_mode = #tpu.pipeline_mode<synchronous>, transform_indices = @transform_7, window_bounds = array<i64: 4, 256>}, {transform_indices = @transform_8, window_bounds = array<i64: 1, 4, 256>}]} {
    %c0 = arith.constant 0 : index
    %c0_0 = arith.constant 0 : index
    %c0_1 = arith.constant 0 : index
    %0 = vector.load %arg1[%c0, %c0_0, %c0_1] : memref<1x4x256xf32, #tpu.memory_space<vmem>>, vector<1x4x256xf32>
    %1 = vector.shape_cast %0 : vector<1x4x256xf32> to vector<4x256xf32>
    %c0_2 = arith.constant 0 : index
    %c0_3 = arith.constant 0 : index
    %2 = vector.load %arg3[%c0_2, %c0_3] : memref<16x1xf32, #tpu.memory_space<vmem>>, vector<16x1xf32>
    %c0_4 = arith.constant 0 : index
    %c0_5 = arith.constant 0 : index
    %3 = vector.load %arg5[%c0_4, %c0_5] : memref<16x1xf32, #tpu.memory_space<vmem>>, vector<16x1xf32>
    %c0_6 = arith.constant 0 : index
    %c0_7 = arith.constant 0 : index
    %4 = vector.load %arg7[%c0_6, %c0_7] : memref<4x1xf32, #tpu.memory_space<vmem>>, vector<4x1xf32>
    %c0_8 = arith.constant 0 : index
    %c0_9 = arith.constant 0 : index
    %5 = vector.load %arg8[%c0_8, %c0_9] : memref<4x256xf32, #tpu.memory_space<vmem>>, vector<4x256xf32>
    %6 = vector.extract_strided_slice %5 {offsets = [0, 0], sizes = [1, 256], strides = [1, 1]} : vector<4x256xf32> to vector<1x256xf32>
    %7 = vector.extract_strided_slice %5 {offsets = [1, 0], sizes = [1, 256], strides = [1, 1]} : vector<4x256xf32> to vector<1x256xf32>
    %8 = vector.extract_strided_slice %5 {offsets = [2, 0], sizes = [1, 256], strides = [1, 1]} : vector<4x256xf32> to vector<1x256xf32>
    %9 = vector.extract_strided_slice %5 {offsets = [3, 0], sizes = [1, 256], strides = [1, 1]} : vector<4x256xf32> to vector<1x256xf32>
    %c0_10 = arith.constant 0 : index
    %c0_11 = arith.constant 0 : index
    %10 = vector.load %arg2[%c0_10, %c0_11] : memref<16x4xf32, #tpu.memory_space<vmem>>, vector<16x4xf32>
    %11 = vector.shape_cast %2 : vector<16x1xf32> to vector<16x1xf32>
    %12 = vector.broadcast %11 : vector<16x1xf32> to vector<16x256xf32>
    %13 = vector.extract_strided_slice %10 {offsets = [0, 0], sizes = [16, 1], strides = [1, 1]} : vector<16x4xf32> to vector<16x1xf32>
    %14 = vector.extract_strided_slice %1 {offsets = [0, 0], sizes = [1, 256], strides = [1, 1]} : vector<4x256xf32> to vector<1x256xf32>
    %15 = vector.broadcast %13 : vector<16x1xf32> to vector<16x256xf32>
    %16 = vector.broadcast %14 : vector<1x256xf32> to vector<16x256xf32>
    %17 = arith.mulf %15, %16 : vector<16x256xf32>
    %18 = arith.addf %12, %17 : vector<16x256xf32>
    %19 = vector.extract_strided_slice %10 {offsets = [0, 1], sizes = [16, 1], strides = [1, 1]} : vector<16x4xf32> to vector<16x1xf32>
    %20 = vector.extract_strided_slice %1 {offsets = [1, 0], sizes = [1, 256], strides = [1, 1]} : vector<4x256xf32> to vector<1x256xf32>
    %21 = vector.broadcast %19 : vector<16x1xf32> to vector<16x256xf32>
    %22 = vector.broadcast %20 : vector<1x256xf32> to vector<16x256xf32>
    %23 = arith.mulf %21, %22 : vector<16x256xf32>
    %24 = arith.addf %18, %23 : vector<16x256xf32>
    %25 = vector.extract_strided_slice %10 {offsets = [0, 2], sizes = [16, 1], strides = [1, 1]} : vector<16x4xf32> to vector<16x1xf32>
    %26 = vector.extract_strided_slice %1 {offsets = [2, 0], sizes = [1, 256], strides = [1, 1]} : vector<4x256xf32> to vector<1x256xf32>
    %27 = vector.broadcast %25 : vector<16x1xf32> to vector<16x256xf32>
    %28 = vector.broadcast %26 : vector<1x256xf32> to vector<16x256xf32>
    %29 = arith.mulf %27, %28 : vector<16x256xf32>
    %30 = arith.addf %24, %29 : vector<16x256xf32>
    %31 = vector.extract_strided_slice %10 {offsets = [0, 3], sizes = [16, 1], strides = [1, 1]} : vector<16x4xf32> to vector<16x1xf32>
    %32 = vector.extract_strided_slice %1 {offsets = [3, 0], sizes = [1, 256], strides = [1, 1]} : vector<4x256xf32> to vector<1x256xf32>
    %33 = vector.broadcast %31 : vector<16x1xf32> to vector<16x256xf32>
    %34 = vector.broadcast %32 : vector<1x256xf32> to vector<16x256xf32>
    %35 = arith.mulf %33, %34 : vector<16x256xf32>
    %36 = arith.addf %30, %35 : vector<16x256xf32>
    %c0_12 = arith.constant 0 : index
    %c0_13 = arith.constant 0 : index
    %37 = vector.load %arg4[%c0_12, %c0_13] : memref<16x9xf32, #tpu.memory_space<vmem>>, vector<16x9xf32>
    %38 = vector.shape_cast %3 : vector<16x1xf32> to vector<16x1xf32>
    %39 = vector.broadcast %38 : vector<16x1xf32> to vector<16x256xf32>
    %c16_i32 = arith.constant 16 : i32
    %40 = tpu.dynamic_rotate %36 by %c16_i32 dim 1 : vector<16x256xf32>, i32 -> vector<16x256xf32>
    %41 = vector.broadcast %6 : vector<1x256xf32> to vector<16x256xf32>
    %42 = arith.mulf %40, %41 : vector<16x256xf32>
    %c1_i32 = arith.constant 1 : i32
    %43 = tpu.dynamic_rotate %42 by %c1_i32 dim 1 : vector<16x256xf32>, i32 -> vector<16x256xf32>
    %44 = vector.broadcast %8 : vector<1x256xf32> to vector<16x256xf32>
    %45 = arith.mulf %43, %44 : vector<16x256xf32>
    %46 = vector.extract_strided_slice %37 {offsets = [0, 0], sizes = [16, 1], strides = [1, 1]} : vector<16x9xf32> to vector<16x1xf32>
    %47 = vector.broadcast %46 : vector<16x1xf32> to vector<16x256xf32>
    %48 = arith.mulf %47, %45 : vector<16x256xf32>
    %49 = arith.addf %39, %48 : vector<16x256xf32>
    %50 = vector.extract_strided_slice %37 {offsets = [0, 1], sizes = [16, 1], strides = [1, 1]} : vector<16x9xf32> to vector<16x1xf32>
    %51 = vector.broadcast %50 : vector<16x1xf32> to vector<16x256xf32>
    %52 = arith.mulf %51, %42 : vector<16x256xf32>
    %53 = arith.addf %49, %52 : vector<16x256xf32>
    %c255_i32 = arith.constant 255 : i32
    %54 = tpu.dynamic_rotate %42 by %c255_i32 dim 1 : vector<16x256xf32>, i32 -> vector<16x256xf32>
    %55 = vector.broadcast %9 : vector<1x256xf32> to vector<16x256xf32>
    %56 = arith.mulf %54, %55 : vector<16x256xf32>
    %57 = vector.extract_strided_slice %37 {offsets = [0, 2], sizes = [16, 1], strides = [1, 1]} : vector<16x9xf32> to vector<16x1xf32>
    %58 = vector.broadcast %57 : vector<16x1xf32> to vector<16x256xf32>
    %59 = arith.mulf %58, %56 : vector<16x256xf32>
    %60 = arith.addf %53, %59 : vector<16x256xf32>
    %c1_i32_14 = arith.constant 1 : i32
    %61 = tpu.dynamic_rotate %36 by %c1_i32_14 dim 1 : vector<16x256xf32>, i32 -> vector<16x256xf32>
    %62 = vector.broadcast %8 : vector<1x256xf32> to vector<16x256xf32>
    %63 = arith.mulf %61, %62 : vector<16x256xf32>
    %64 = vector.extract_strided_slice %37 {offsets = [0, 3], sizes = [16, 1], strides = [1, 1]} : vector<16x9xf32> to vector<16x1xf32>
    %65 = vector.broadcast %64 : vector<16x1xf32> to vector<16x256xf32>
    %66 = arith.mulf %65, %63 : vector<16x256xf32>
    %67 = arith.addf %60, %66 : vector<16x256xf32>
    %68 = vector.extract_strided_slice %37 {offsets = [0, 4], sizes = [16, 1], strides = [1, 1]} : vector<16x9xf32> to vector<16x1xf32>
    %69 = vector.broadcast %68 : vector<16x1xf32> to vector<16x256xf32>
    %70 = arith.mulf %69, %36 : vector<16x256xf32>
    %71 = arith.addf %67, %70 : vector<16x256xf32>
    %c255_i32_15 = arith.constant 255 : i32
    %72 = tpu.dynamic_rotate %36 by %c255_i32_15 dim 1 : vector<16x256xf32>, i32 -> vector<16x256xf32>
    %73 = vector.broadcast %9 : vector<1x256xf32> to vector<16x256xf32>
    %74 = arith.mulf %72, %73 : vector<16x256xf32>
    %75 = vector.extract_strided_slice %37 {offsets = [0, 5], sizes = [16, 1], strides = [1, 1]} : vector<16x9xf32> to vector<16x1xf32>
    %76 = vector.broadcast %75 : vector<16x1xf32> to vector<16x256xf32>
    %77 = arith.mulf %76, %74 : vector<16x256xf32>
    %78 = arith.addf %71, %77 : vector<16x256xf32>
    %c240_i32 = arith.constant 240 : i32
    %79 = tpu.dynamic_rotate %36 by %c240_i32 dim 1 : vector<16x256xf32>, i32 -> vector<16x256xf32>
    %80 = vector.broadcast %7 : vector<1x256xf32> to vector<16x256xf32>
    %81 = arith.mulf %79, %80 : vector<16x256xf32>
    %c1_i32_16 = arith.constant 1 : i32
    %82 = tpu.dynamic_rotate %81 by %c1_i32_16 dim 1 : vector<16x256xf32>, i32 -> vector<16x256xf32>
    %83 = vector.broadcast %8 : vector<1x256xf32> to vector<16x256xf32>
    %84 = arith.mulf %82, %83 : vector<16x256xf32>
    %85 = vector.extract_strided_slice %37 {offsets = [0, 6], sizes = [16, 1], strides = [1, 1]} : vector<16x9xf32> to vector<16x1xf32>
    %86 = vector.broadcast %85 : vector<16x1xf32> to vector<16x256xf32>
    %87 = arith.mulf %86, %84 : vector<16x256xf32>
    %88 = arith.addf %78, %87 : vector<16x256xf32>
    %89 = vector.extract_strided_slice %37 {offsets = [0, 7], sizes = [16, 1], strides = [1, 1]} : vector<16x9xf32> to vector<16x1xf32>
    %90 = vector.broadcast %89 : vector<16x1xf32> to vector<16x256xf32>
    %91 = arith.mulf %90, %81 : vector<16x256xf32>
    %92 = arith.addf %88, %91 : vector<16x256xf32>
    %c255_i32_17 = arith.constant 255 : i32
    %93 = tpu.dynamic_rotate %81 by %c255_i32_17 dim 1 : vector<16x256xf32>, i32 -> vector<16x256xf32>
    %94 = vector.broadcast %9 : vector<1x256xf32> to vector<16x256xf32>
    %95 = arith.mulf %93, %94 : vector<16x256xf32>
    %96 = vector.extract_strided_slice %37 {offsets = [0, 8], sizes = [16, 1], strides = [1, 1]} : vector<16x9xf32> to vector<16x1xf32>
    %97 = vector.broadcast %96 : vector<16x1xf32> to vector<16x256xf32>
    %98 = arith.mulf %97, %95 : vector<16x256xf32>
    %99 = arith.addf %92, %98 : vector<16x256xf32>
    %100 = vector.extract_strided_slice %99 {offsets = [0, 0], sizes = [8, 256], strides = [1, 1]} : vector<16x256xf32> to vector<8x256xf32>
    %cst = arith.constant 5.000000e-01 : f32
    %101 = vector.broadcast %cst : f32 to vector<8x256xf32>
    %102 = arith.mulf %101, %100 : vector<8x256xf32>
    %cst_18 = arith.constant 0.707106769 : f32
    %103 = vector.broadcast %cst_18 : f32 to vector<8x256xf32>
    %104 = arith.mulf %100, %103 : vector<8x256xf32>
    %105 = math.absf %104 : vector<8x256xf32>
    %cst_19 = arith.constant 0.327591091 : f32
    %106 = vector.broadcast %cst_19 : f32 to vector<8x256xf32>
    %107 = arith.mulf %106, %105 : vector<8x256xf32>
    %cst_20 = arith.constant 1.000000e+00 : f32
    %108 = vector.broadcast %cst_20 : f32 to vector<8x256xf32>
    %109 = arith.addf %108, %107 : vector<8x256xf32>
    %cst_21 = arith.constant 1.000000e+00 : f32
    %110 = vector.broadcast %cst_21 : f32 to vector<8x256xf32>
    %111 = arith.divf %110, %109 : vector<8x256xf32>
    %cst_22 = arith.constant 1.06140542 : f32
    %112 = vector.broadcast %cst_22 : f32 to vector<8x256xf32>
    %113 = arith.mulf %112, %111 : vector<8x256xf32>
    %cst_23 = arith.constant -1.45315206 : f32
    %114 = vector.broadcast %cst_23 : f32 to vector<8x256xf32>
    %115 = arith.addf %113, %114 : vector<8x256xf32>
    %116 = arith.mulf %115, %111 : vector<8x256xf32>
    %cst_24 = arith.constant 1.42141378 : f32
    %117 = vector.broadcast %cst_24 : f32 to vector<8x256xf32>
    %118 = arith.addf %116, %117 : vector<8x256xf32>
    %119 = arith.mulf %118, %111 : vector<8x256xf32>
    %cst_25 = arith.constant -0.284496725 : f32
    %120 = vector.broadcast %cst_25 : f32 to vector<8x256xf32>
    %121 = arith.addf %119, %120 : vector<8x256xf32>
    %122 = arith.mulf %121, %111 : vector<8x256xf32>
    %cst_26 = arith.constant 0.254829586 : f32
    %123 = vector.broadcast %cst_26 : f32 to vector<8x256xf32>
    %124 = arith.addf %122, %123 : vector<8x256xf32>
    %125 = arith.mulf %124, %111 : vector<8x256xf32>
    %cst_27 = arith.constant 0.000000e+00 : f32
    %126 = vector.broadcast %cst_27 : f32 to vector<8x256xf32>
    %127 = arith.subf %126, %105 : vector<8x256xf32>
    %128 = arith.mulf %127, %105 : vector<8x256xf32>
    %129 = math.exp %128 : vector<8x256xf32>
    %130 = arith.mulf %125, %129 : vector<8x256xf32>
    %cst_28 = arith.constant 1.000000e+00 : f32
    %131 = vector.broadcast %cst_28 : f32 to vector<8x256xf32>
    %132 = arith.subf %131, %130 : vector<8x256xf32>
    %cst_29 = arith.constant 0.000000e+00 : f32
    %133 = vector.broadcast %cst_29 : f32 to vector<8x256xf32>
    %134 = arith.cmpf oge, %104, %133 : vector<8x256xf32>
    %cst_30 = arith.constant 0.000000e+00 : f32
    %135 = vector.broadcast %cst_30 : f32 to vector<8x256xf32>
    %136 = arith.subf %135, %132 : vector<8x256xf32>
    %137 = arith.select %134, %132, %136 : vector<8x256xi1>, vector<8x256xf32>
    %cst_31 = arith.constant 1.000000e+00 : f32
    %138 = vector.broadcast %cst_31 : f32 to vector<8x256xf32>
    %139 = arith.addf %138, %137 : vector<8x256xf32>
    %140 = arith.mulf %102, %139 : vector<8x256xf32>
    %141 = vector.extract_strided_slice %99 {offsets = [8, 0], sizes = [8, 256], strides = [1, 1]} : vector<16x256xf32> to vector<8x256xf32>
    %142 = arith.mulf %140, %141 : vector<8x256xf32>
    %c0_32 = arith.constant 0 : index
    %c0_33 = arith.constant 0 : index
    %143 = vector.load %arg6[%c0_32, %c0_33] : memref<4x8xf32, #tpu.memory_space<vmem>>, vector<4x8xf32>
    %144 = vector.shape_cast %4 : vector<4x1xf32> to vector<4x1xf32>
    %145 = vector.broadcast %144 : vector<4x1xf32> to vector<4x256xf32>
    %146 = vector.extract_strided_slice %143 {offsets = [0, 0], sizes = [4, 1], strides = [1, 1]} : vector<4x8xf32> to vector<4x1xf32>
    %147 = vector.extract_strided_slice %142 {offsets = [0, 0], sizes = [1, 256], strides = [1, 1]} : vector<8x256xf32> to vector<1x256xf32>
    %148 = vector.broadcast %146 : vector<4x1xf32> to vector<4x256xf32>
    %149 = vector.broadcast %147 : vector<1x256xf32> to vector<4x256xf32>
    %150 = arith.mulf %148, %149 : vector<4x256xf32>
    %151 = arith.addf %145, %150 : vector<4x256xf32>
    %152 = vector.extract_strided_slice %143 {offsets = [0, 1], sizes = [4, 1], strides = [1, 1]} : vector<4x8xf32> to vector<4x1xf32>
    %153 = vector.extract_strided_slice %142 {offsets = [1, 0], sizes = [1, 256], strides = [1, 1]} : vector<8x256xf32> to vector<1x256xf32>
    %154 = vector.broadcast %152 : vector<4x1xf32> to vector<4x256xf32>
    %155 = vector.broadcast %153 : vector<1x256xf32> to vector<4x256xf32>
    %156 = arith.mulf %154, %155 : vector<4x256xf32>
    %157 = arith.addf %151, %156 : vector<4x256xf32>
    %158 = vector.extract_strided_slice %143 {offsets = [0, 2], sizes = [4, 1], strides = [1, 1]} : vector<4x8xf32> to vector<4x1xf32>
    %159 = vector.extract_strided_slice %142 {offsets = [2, 0], sizes = [1, 256], strides = [1, 1]} : vector<8x256xf32> to vector<1x256xf32>
    %160 = vector.broadcast %158 : vector<4x1xf32> to vector<4x256xf32>
    %161 = vector.broadcast %159 : vector<1x256xf32> to vector<4x256xf32>
    %162 = arith.mulf %160, %161 : vector<4x256xf32>
    %163 = arith.addf %157, %162 : vector<4x256xf32>
    %164 = vector.extract_strided_slice %143 {offsets = [0, 3], sizes = [4, 1], strides = [1, 1]} : vector<4x8xf32> to vector<4x1xf32>
    %165 = vector.extract_strided_slice %142 {offsets = [3, 0], sizes = [1, 256], strides = [1, 1]} : vector<8x256xf32> to vector<1x256xf32>
    %166 = vector.broadcast %164 : vector<4x1xf32> to vector<4x256xf32>
    %167 = vector.broadcast %165 : vector<1x256xf32> to vector<4x256xf32>
    %168 = arith.mulf %166, %167 : vector<4x256xf32>
    %169 = arith.addf %163, %168 : vector<4x256xf32>
    %170 = vector.extract_strided_slice %143 {offsets = [0, 4], sizes = [4, 1], strides = [1, 1]} : vector<4x8xf32> to vector<4x1xf32>
    %171 = vector.extract_strided_slice %142 {offsets = [4, 0], sizes = [1, 256], strides = [1, 1]} : vector<8x256xf32> to vector<1x256xf32>
    %172 = vector.broadcast %170 : vector<4x1xf32> to vector<4x256xf32>
    %173 = vector.broadcast %171 : vector<1x256xf32> to vector<4x256xf32>
    %174 = arith.mulf %172, %173 : vector<4x256xf32>
    %175 = arith.addf %169, %174 : vector<4x256xf32>
    %176 = vector.extract_strided_slice %143 {offsets = [0, 5], sizes = [4, 1], strides = [1, 1]} : vector<4x8xf32> to vector<4x1xf32>
    %177 = vector.extract_strided_slice %142 {offsets = [5, 0], sizes = [1, 256], strides = [1, 1]} : vector<8x256xf32> to vector<1x256xf32>
    %178 = vector.broadcast %176 : vector<4x1xf32> to vector<4x256xf32>
    %179 = vector.broadcast %177 : vector<1x256xf32> to vector<4x256xf32>
    %180 = arith.mulf %178, %179 : vector<4x256xf32>
    %181 = arith.addf %175, %180 : vector<4x256xf32>
    %182 = vector.extract_strided_slice %143 {offsets = [0, 6], sizes = [4, 1], strides = [1, 1]} : vector<4x8xf32> to vector<4x1xf32>
    %183 = vector.extract_strided_slice %142 {offsets = [6, 0], sizes = [1, 256], strides = [1, 1]} : vector<8x256xf32> to vector<1x256xf32>
    %184 = vector.broadcast %182 : vector<4x1xf32> to vector<4x256xf32>
    %185 = vector.broadcast %183 : vector<1x256xf32> to vector<4x256xf32>
    %186 = arith.mulf %184, %185 : vector<4x256xf32>
    %187 = arith.addf %181, %186 : vector<4x256xf32>
    %188 = vector.extract_strided_slice %143 {offsets = [0, 7], sizes = [4, 1], strides = [1, 1]} : vector<4x8xf32> to vector<4x1xf32>
    %189 = vector.extract_strided_slice %142 {offsets = [7, 0], sizes = [1, 256], strides = [1, 1]} : vector<8x256xf32> to vector<1x256xf32>
    %190 = vector.broadcast %188 : vector<4x1xf32> to vector<4x256xf32>
    %191 = vector.broadcast %189 : vector<1x256xf32> to vector<4x256xf32>
    %192 = arith.mulf %190, %191 : vector<4x256xf32>
    %193 = arith.addf %187, %192 : vector<4x256xf32>
    %c0_34 = arith.constant 0 : index
    %c0_35 = arith.constant 0 : index
    %c0_36 = arith.constant 0 : index
    %194 = vector.load %arg9[%c0_34, %c0_35, %c0_36] : memref<1x4x256xf32, #tpu.memory_space<vmem>>, vector<1x4x256xf32>
    %195 = vector.shape_cast %194 : vector<1x4x256xf32> to vector<4x256xf32>
    %196 = vector.shape_cast %193 : vector<4x256xf32> to vector<1x4x256xf32>
    tpu.vector_store %arg9[%c0_34, %c0_35, %c0_36], %196 {strides = array<i32>} : memref<1x4x256xf32, #tpu.memory_space<vmem>>, vector<1x4x256xf32>,
    return
  }
  func.func @transform_0(%arg0: i32) -> (i32, i32, i32) {
    %c0_i32 = arith.constant 0 : i32
    %c0_i32_0 = arith.constant 0 : i32
    %c0_i32_1 = arith.constant 0 : i32
    return %arg0, %c0_i32, %c0_i32_0 : i32, i32, i32
  }
  func.func @transform_1(%arg0: i32) -> (i32, i32) {
    %c0_i32 = arith.constant 0 : i32
    %c0_i32_0 = arith.constant 0 : i32
    %c0_i32_1 = arith.constant 0 : i32
    return %c0_i32, %c0_i32_0 : i32, i32
  }
  func.func @transform_2(%arg0: i32) -> (i32, i32) {
    %c0_i32 = arith.constant 0 : i32
    %c0_i32_0 = arith.constant 0 : i32
    %c0_i32_1 = arith.constant 0 : i32
    return %c0_i32, %c0_i32_0 : i32, i32
  }
  func.func @transform_3(%arg0: i32) -> (i32, i32) {
    %c0_i32 = arith.constant 0 : i32
    %c0_i32_0 = arith.constant 0 : i32
    %c0_i32_1 = arith.constant 0 : i32
    return %c0_i32, %c0_i32_0 : i32, i32
  }
  func.func @transform_4(%arg0: i32) -> (i32, i32) {
    %c0_i32 = arith.constant 0 : i32
    %c0_i32_0 = arith.constant 0 : i32
    %c0_i32_1 = arith.constant 0 : i32
    return %c0_i32, %c0_i32_0 : i32, i32
  }
  func.func @transform_5(%arg0: i32) -> (i32, i32) {
    %c0_i32 = arith.constant 0 : i32
    %c0_i32_0 = arith.constant 0 : i32
    %c0_i32_1 = arith.constant 0 : i32
    return %c0_i32, %c0_i32_0 : i32, i32
  }
  func.func @transform_6(%arg0: i32) -> (i32, i32) {
    %c0_i32 = arith.constant 0 : i32
    %c0_i32_0 = arith.constant 0 : i32
    %c0_i32_1 = arith.constant 0 : i32
    return %c0_i32, %c0_i32_0 : i32, i32
  }
  func.func @transform_7(%arg0: i32) -> (i32, i32) {
    %c0_i32 = arith.constant 0 : i32
    %c0_i32_0 = arith.constant 0 : i32
    %c0_i32_1 = arith.constant 0 : i32
    return %c0_i32, %c0_i32_0 : i32, i32
  }
  func.func @transform_8(%arg0: i32) -> (i32, i32, i32) {
    %c0_i32 = arith.constant 0 : i32
    %c0_i32_0 = arith.constant 0 : i32
    %c0_i32_1 = arith.constant 0 : i32
    return %arg0, %c0_i32, %c0_i32_0 : i32, i32, i32
  }
}

</mosaic_0001>

<llo_original>
// kernel: tpu_custom_call.1
$region0: #{tpu_custom_call.1}
  #allocation0 [shape = 'u32[]', space=smem, size = 0x4, offset = 0x4, fixed_abs, tag = 'smem constant byte address 0x4 - core index']
  #allocation1 [shape = 'u32[144,128]{1,0:T(1,128)}', space=vmem, size = 0x12000, scoped, tag = 'internal scratch']
  %s0 = inlined_call_operand.vmem [shape: f32[2,4,256], index: 0, kind: input, shape index: {}]
  %s1 = inlined_call_operand.vmem [shape: f32[16,4], index: 1, kind: input, shape index: {}]
  %s2 = inlined_call_operand.vmem [shape: f32[16,1], index: 2, kind: input, shape index: {}]
  %s3 = inlined_call_operand.vmem [shape: f32[16,9], index: 3, kind: input, shape index: {}]
  %s4 = inlined_call_operand.vmem [shape: f32[16,1], index: 4, kind: input, shape index: {}]
  %s5 = inlined_call_operand.vmem [shape: f32[4,8], index: 5, kind: input, shape index: {}]
  %s6 = inlined_call_operand.vmem [shape: f32[4,1], index: 6, kind: input, shape index: {}]
  %s7 = inlined_call_operand.vmem [shape: f32[4,256], index: 7, kind: input, shape index: {}]
  %s8 = inlined_call_operand.hbm [shape: f32[2,4,256], index: 8, kind: output, shape index: {}]
  %s9 = sld [smem:[#allocation0]]
  $region65: #{tpu_custom_call.1} parent=0
    _
  %s11 = ssub.s32 1, %s9
  %s12 = scalar_select 0, %s11, %s9
  $region1: #{tpu_custom_call.1} parent=0
    #allocation2 [shape = 'u8[8192]{0}', space=vmem, size = 0x2000, scoped, tag = 'output window, operand 0']
    #allocation3 [shape = 's32[2]{0}', space=sflag, size = 0x8, scoped, tag = 'scoped memory for tpu_custom_call.1']
    %13 = vsyncpa [#allocation3], 0
    %s14 = scalar_lea.sflag [#allocation3], 1
    %15 = vsyncpa %s14, 0
    loop: start=0, step=1, limit=4
    $region2: #{tpu_custom_call.1} parent=1 // loop_pre_header
      _
    $region3: #{tpu_custom_call.1} parent=1 // loop_header
      %s17 = sphi 0, %s21
      %p18 = scmp.ge.s32.totalorder %s17, 4
      %s27 = sphi 0, %s29
      %s30 = sphi 0, %s27
      %s31 = sphi 0, %s30
      %s47 = sphi 0, %s31
      %s51 = sphi 0, %s51
      %s53 = sphi 0, %s51
      %s54 = sphi 0, %s53
      %s68 = sphi 0, %s54
      %s72 = sphi 0, %s72
      %s74 = sphi 0, %s72
      %s75 = sphi 0, %s74
      %s89 = sphi 0, %s75
      %s93 = sphi 0, %s93
      %s95 = sphi 0, %s93
      %s96 = sphi 0, %s95
      %s110 = sphi 0, %s96
      %s114 = sphi 0, %s114
      %s116 = sphi 0, %s114
      %s117 = sphi 0, %s116
      %s131 = sphi 0, %s117
      %s135 = sphi 0, %s135
      %s137 = sphi 0, %s135
      %s138 = sphi 0, %s137
      %s152 = sphi 0, %s138
      %s156 = sphi 0, %s156
      %s158 = sphi 0, %s156
      %s159 = sphi 0, %s158
      %s173 = sphi 0, %s159
      %s177 = sphi 0, %s177
      %s179 = sphi 0, %s177
      %s180 = sphi 0, %s179
      %s194 = sphi 0, %s180
      %s200 = sphi 0, %s202
      %s203 = sphi 0, %s200
      %s204 = sphi 0, %s203
      %s220 = sphi 0, %s204
    $region4: #{tpu_custom_call.1} parent=1 // loop_header_branch
      %20 = sbr.rel (%p18) target = $region8
    $region5: #{tpu_custom_call.1} parent=1 // loop_body
      %s22 = ssub.s32 %s17, 1
      %s23 = ssub.s32 %s17, 2
      %s24 = sadd.s32 %s17, 1
      %s25 = ssub.s32 %s17, %s24
      %p26 = scmp.eq.s32.totalorder %s25, 0
      %s28 = sadd.s32 %s27, 1
      %s29 = scalar_select %p26, %s27, %s28
      %p32 = pneg %p26
      %p33 = scmp.eq.s32.totalorder %s17, 1
      %p34 = por %p32, %p33
      %p35 = scmp.ne.s32.totalorder %s27, %s30
      %p36 = scmp.eq.s32.totalorder %s17, 0
      %p37 = por %p35, %p36
      %p38 = scmp.ne.s32.totalorder %s27, %s30
      %p39 = scmp.eq.s32.totalorder %s22, 1
      %p40 = por %p38, %p39
      %p41 = scmp.ne.s32.totalorder %s30, %s31
      %p42 = scmp.eq.s32.totalorder %s22, 0
      %p43 = por %p41, %p42
      %p44 = scmp.ne.s32.totalorder %s30, %s31
      %p45 = scmp.eq.s32.totalorder %s23, 1
      %p46 = por %p44, %p45
      %p48 = scmp.ne.s32.totalorder %s31, %s47
      %p49 = scmp.eq.s32.totalorder %s23, 0
      %p50 = por %p48, %p49
      %s52 = sadd.s32 %s51, 1
      %p55 = scmp.eq.s32.totalorder %s17, 1
      %p56 = scmp.ne.s32.totalorder %s51, %s53
      %p57 = scmp.eq.s32.totalorder %s17, 0
      %p58 = por %p56, %p57
      %p59 = scmp.ne.s32.totalorder %s51, %s53
      %p60 = scmp.eq.s32.totalorder %s22, 1
      %p61 = por %p59, %p60
      %p62 = scmp.ne.s32.totalorder %s53, %s54
      %p63 = scmp.eq.s32.totalorder %s22, 0
      %p64 = por %p62, %p63
      %p65 = scmp.ne.s32.totalorder %s53, %s54
      %p66 = scmp.eq.s32.totalorder %s23, 1
      %p67 = por %p65, %p66
      %p69 = scmp.ne.s32.totalorder %s54, %s68
      %p70 = scmp.eq.s32.totalorder %s23, 0
      %p71 = por %p69, %p70
      %s73 = sadd.s32 %s72, 1
      %p76 = scmp.eq.s32.totalorder %s17, 1
      %p77 = scmp.ne.s32.totalorder %s72, %s74
      %p78 = scmp.eq.s32.totalorder %s17, 0
      %p79 = por %p77, %p78
      %p80 = scmp.ne.s32.totalorder %s72, %s74
      %p81 = scmp.eq.s32.totalorder %s22, 1
      %p82 = por %p80, %p81
      %p83 = scmp.ne.s32.totalorder %s74, %s75
      %p84 = scmp.eq.s32.totalorder %s22, 0
      %p85 = por %p83, %p84
      %p86 = scmp.ne.s32.totalorder %s74, %s75
      %p87 = scmp.eq.s32.totalorder %s23, 1
      %p88 = por %p86, %p87
      %p90 = scmp.ne.s32.totalorder %s75, %s89
      %p91 = scmp.eq.s32.totalorder %s23, 0
      %p92 = por %p90, %p91
      %s94 = sadd.s32 %s93, 1
      %p97 = scmp.eq.s32.totalorder %s17, 1
      %p98 = scmp.ne.s32.totalorder %s93, %s95
      %p99 = scmp.eq.s32.totalorder %s17, 0
      %p100 = por %p98, %p99
      %p101 = scmp.ne.s32.totalorder %s93, %s95
      %p102 = scmp.eq.s32.totalorder %s22, 1
      %p103 = por %p101, %p102
      %p104 = scmp.ne.s32.totalorder %s95, %s96
      %p105 = scmp.eq.s32.totalorder %s22, 0
      %p106 = por %p104, %p105
      %p107 = scmp.ne.s32.totalorder %s95, %s96
      %p108 = scmp.eq.s32.totalorder %s23, 1
      %p109 = por %p107, %p108
      %p111 = scmp.ne.s32.totalorder %s96, %s110
      %p112 = scmp.eq.s32.totalorder %s23, 0
      %p113 = por %p111, %p112
      %s115 = sadd.s32 %s114, 1
      %p118 = scmp.eq.s32.totalorder %s17, 1
      %p119 = scmp.ne.s32.totalorder %s114, %s116
      %p120 = scmp.eq.s32.totalorder %s17, 0
      %p121 = por %p119, %p120
      %p122 = scmp.ne.s32.totalorder %s114, %s116
      %p123 = scmp.eq.s32.totalorder %s22, 1
      %p124 = por %p122, %p123
      %p125 = scmp.ne.s32.totalorder %s116, %s117
      %p126 = scmp.eq.s32.totalorder %s22, 0
      %p127 = por %p125, %p126
      %p128 = scmp.ne.s32.totalorder %s116, %s117
      %p129 = scmp.eq.s32.totalorder %s23, 1
      %p130 = por %p128, %p129
      %p132 = scmp.ne.s32.totalorder %s117, %s131
      %p133 = scmp.eq.s32.totalorder %s23, 0
      %p134 = por %p132, %p133
      %s136 = sadd.s32 %s135, 1
      %p139 = scmp.eq.s32.totalorder %s17, 1
      %p140 = scmp.ne.s32.totalorder %s135, %s137
      %p141 = scmp.eq.s32.totalorder %s17, 0
      %p142 = por %p140, %p141
      %p143 = scmp.ne.s32.totalorder %s135, %s137
      %p144 = scmp.eq.s32.totalorder %s22, 1
      %p145 = por %p143, %p144
      %p146 = scmp.ne.s32.totalorder %s137, %s138
      %p147 = scmp.eq.s32.totalorder %s22, 0
      %p148 = por %p146, %p147
      %p149 = scmp.ne.s32.totalorder %s137, %s138
      %p150 = scmp.eq.s32.totalorder %s23, 1
      %p151 = por %p149, %p150
      %p153 = scmp.ne.s32.totalorder %s138, %s152
      %p154 = scmp.eq.s32.totalorder %s23, 0
      %p155 = por %p153, %p154
      %s157 = sadd.s32 %s156, 1
      %p160 = scmp.eq.s32.totalorder %s17, 1
      %p161 = scmp.ne.s32.totalorder %s156, %s158
      %p162 = scmp.eq.s32.totalorder %s17, 0
      %p163 = por %p161, %p162
      %p164 = scmp.ne.s32.totalorder %s156, %s158
      %p165 = scmp.eq.s32.totalorder %s22, 1
      %p166 = por %p164, %p165
      %p167 = scmp.ne.s32.totalorder %s158, %s159
      %p168 = scmp.eq.s32.totalorder %s22, 0
      %p169 = por %p167, %p168
      %p170 = scmp.ne.s32.totalorder %s158, %s159
      %p171 = scmp.eq.s32.totalorder %s23, 1
      %p172 = por %p170, %p171
      %p174 = scmp.ne.s32.totalorder %s159, %s173
      %p175 = scmp.eq.s32.totalorder %s23, 0
      %p176 = por %p174, %p175
      %s178 = sadd.s32 %s177, 1
      %p181 = scmp.eq.s32.totalorder %s17, 1
      %p182 = scmp.ne.s32.totalorder %s177, %s179
      %p183 = scmp.eq.s32.totalorder %s17, 0
      %p184 = por %p182, %p183
      %p185 = scmp.ne.s32.totalorder %s177, %s179
      %p186 = scmp.eq.s32.totalorder %s22, 1
      %p187 = por %p185, %p186
      %p188 = scmp.ne.s32.totalorder %s179, %s180
      %p189 = scmp.eq.s32.totalorder %s22, 0
      %p190 = por %p188, %p189
      %p191 = scmp.ne.s32.totalorder %s179, %s180
      %p192 = scmp.eq.s32.totalorder %s23, 1
      %p193 = por %p191, %p192
      %p195 = scmp.ne.s32.totalorder %s180, %s194
      %p196 = scmp.eq.s32.totalorder %s23, 0
      %p197 = por %p195, %p196
      %s198 = ssub.s32 %s17, %s24
      %p199 = scmp.eq.s32.totalorder %s198, 0
      %s201 = sadd.s32 %s200, 1
      %s202 = scalar_select %p199, %s200, %s201
      %p205 = pneg %p199
      %p206 = scmp.eq.s32.totalorder %s17, 1
      %p207 = por %p205, %p206
      %p208 = scmp.ne.s32.totalorder %s200, %s203
      %p209 = scmp.eq.s32.totalorder %s17, 0
      %p210 = por %p208, %p209
      %p211 = scmp.ne.s32.totalorder %s200, %s203
      %p212 = scmp.eq.s32.totalorder %s22, 1
      %p213 = por %p211, %p212
      %p214 = scmp.ne.s32.totalorder %s203, %s204
      %p215 = scmp.eq.s32.totalorder %s22, 0
      %p216 = por %p214, %p215
      %p217 = scmp.ne.s32.totalorder %s203, %s204
      %p218 = scmp.eq.s32.totalorder %s23, 1
      %p219 = por %p217, %p218
      %p221 = scmp.ne.s32.totalorder %s204, %s220
      %p222 = scmp.eq.s32.totalorder %s23, 0
      %p223 = por %p221, %p222
      %p224 = scmp.le.s32.totalorder 1, %s17
      %p225 = scmp.lt.s32.totalorder %s17, 3
      %p226 = pnand %p224, %p225
      %p227 = pneg %p226
      // Predicated region
      $region9: #{tpu_custom_call.1} parent=5 // pred_check
        _
      $region10: #{tpu_custom_call.1} parent=5 // pred_check_branch
        %229 = sbr.rel (%p226) target = $region12
      $region11: #{tpu_custom_call.1} parent=5 // pred_region
        %s230 = ssub.s32 %s17, 1
        // Predicated region
        $region13: #{tpu_custom_call.1} parent=11 // pred_check
          %p231 = pneg %p64
        $region14: #{tpu_custom_call.1} parent=11 // pred_check_branch
          %233 = sbr.rel (%p231) target = $region16
        $region15: #{tpu_custom_call.1} parent=11 // pred_region
          _
        $region16: #{tpu_custom_call.1} parent=11 // pred_fallthru
          _
        // Predicated region
        $region17: #{tpu_custom_call.1} parent=11 // pred_check
          %p234 = pneg %p85
        $region18: #{tpu_custom_call.1} parent=11 // pred_check_branch
          %236 = sbr.rel (%p234) target = $region20
        $region19: #{tpu_custom_call.1} parent=11 // pred_region
          _
        $region20: #{tpu_custom_call.1} parent=11 // pred_fallthru
          _
        // Predicated region
        $region21: #{tpu_custom_call.1} parent=11 // pred_check
          %p237 = pneg %p106
        $region22: #{tpu_custom_call.1} parent=11 // pred_check_branch
          %239 = sbr.rel (%p237) target = $region24
        $region23: #{tpu_custom_call.1} parent=11 // pred_region
          _
        $region24: #{tpu_custom_call.1} parent=11 // pred_fallthru
          _
        // Predicated region
        $region25: #{tpu_custom_call.1} parent=11 // pred_check
          %p240 = pneg %p127
        $region26: #{tpu_custom_call.1} parent=11 // pred_check_branch
          %242 = sbr.rel (%p240) target = $region28
        $region27: #{tpu_custom_call.1} parent=11 // pred_region
          _
        $region28: #{tpu_custom_call.1} parent=11 // pred_fallthru
          _
        // Predicated region
        $region29: #{tpu_custom_call.1} parent=11 // pred_check
          %p243 = pneg %p148
        $region30: #{tpu_custom_call.1} parent=11 // pred_check_branch
          %245 = sbr.rel (%p243) target = $region32
        $region31: #{tpu_custom_call.1} parent=11 // pred_region
          _
        $region32: #{tpu_custom_call.1} parent=11 // pred_fallthru
          _
        // Predicated region
        $region33: #{tpu_custom_call.1} parent=11 // pred_check
          %p246 = pneg %p169
        $region34: #{tpu_custom_call.1} parent=11 // pred_check_branch
          %248 = sbr.rel (%p246) target = $region36
        $region35: #{tpu_custom_call.1} parent=11 // pred_region
          _
        $region36: #{tpu_custom_call.1} parent=11 // pred_fallthru
          _
        // Predicated region
        $region37: #{tpu_custom_call.1} parent=11 // pred_check
          %p249 = pneg %p190
        $region38: #{tpu_custom_call.1} parent=11 // pred_check_branch
          %251 = sbr.rel (%p249) target = $region40
        $region39: #{tpu_custom_call.1} parent=11 // pred_region
          _
        $region40: #{tpu_custom_call.1} parent=11 // pred_fallthru
          _
      $region12: #{tpu_custom_call.1} parent=5 // pred_fallthru
        _
      %p252 = scmp.lt.s32.totalorder %s17, 2
      // Predicated region
      $region41: #{tpu_custom_call.1} parent=5 // pred_check
        %p253 = pneg %p252
      $region42: #{tpu_custom_call.1} parent=5 // pred_check_branch
        %255 = sbr.rel (%p253) target = $region44
      $region43: #{tpu_custom_call.1} parent=5 // pred_region
        // Predicated region
        $region45: #{tpu_custom_call.1} parent=43 // pred_check
          %p256 = pneg %p37
        $region46: #{tpu_custom_call.1} parent=43 // pred_check_branch
          %258 = sbr.rel (%p256) target = $region48
        $region47: #{tpu_custom_call.1} parent=43 // pred_region
          %p259 = scmp.lt.s32.totalorder %s17, 1
          %s260 = scalar_select %p259, %s17, 1
          %s261 = smul.addr %s260, 2
          %s262 = smul.addr %s261, 4
          %s263 = scalar_lea.vmem %s0, %s262
        $region48: #{tpu_custom_call.1} parent=43 // pred_fallthru
          _
      $region44: #{tpu_custom_call.1} parent=5 // pred_fallthru
        _
      %p264 = scmp.le.s32.totalorder 1, %s17
      %p265 = scmp.lt.s32.totalorder %s17, 3
      %p266 = pnand %p264, %p265
      %p267 = pneg %p266
      // Predicated region
      $region49: #{tpu_custom_call.1} parent=5 // pred_check
        _
      $region50: #{tpu_custom_call.1} parent=5 // pred_check_branch
        %269 = sbr.rel (%p266) target = $region52
      $region51: #{tpu_custom_call.1} parent=5 // pred_region
        %s270 = ssub.s32 %s17, 1
        %p271 = scmp.lt.s32.totalorder %s22, 1
        %s272 = scalar_select %p271, %s22, 1
        %s273 = smul.addr %s272, 2
        %s274 = smul.addr %s273, 4
        %s275 = scalar_lea.vmem %s0, %s274
        %p276 = pneg %p43
        %p277 = pneg %p40
        %p278 = pneg %p64
        %p279 = pneg %p61
        %p280 = pneg %p85
        %p281 = pneg %p82
        %p282 = pneg %p106
        %p283 = pneg %p103
        %p284 = pneg %p127
        %p285 = pneg %p124
        %p286 = pneg %p148
        %p287 = pneg %p145
        %p288 = pneg %p169
        %p289 = pneg %p166
        %p290 = pneg %p190
        %p291 = pneg %p187
        %p292 = pneg %p216
        %p293 = pneg %p213
        %s294 = sand.u32 %s203, 1
        %s295 = scalar_lea.sflag [#allocation3], %s294
        %s296 = sand.u32 %s203, 1
        %s297 = smul.addr %s296, 8
        %s298 = scalar_lea.vmem [#allocation2], %s297
        %p299 = scmp.lt.s32.totalorder %s22, 1
        %s300 = scalar_select %p299, %s22, 1
        %s301 = smul.addr %s300, 2
        %s302 = smul.addr %s301, 4
        %s303 = scalar_lea.vmem %s0, %s302
        %v304 = vld [vmem:[%s303] sm:$0xff]
        %v305 = vld [vmem:[%s2] sm:$0xff]
        %v306 = vld [vmem:[%s2 + $0x8] sm:$0xff]
        %v307 = vld [vmem:[%s4] sm:$0xff]
        %v308 = vld [vmem:[%s4 + $0x8] sm:$0xff]
        %v309 = vld [vmem:[%s6] sm:$0xf]
        %v310 = vld [vmem:[%s7] sm:$0xff]
        %v311 = vld [vmem:[%s1] sm:$0xff]
        %v312 = vld [vmem:[%s1 + $0x8] sm:$0xff]
        %314 = vset.pattern.permute.xlu0 0
        %315 = vperm.xlu0 %314, %v305
        %v316 = vpop.permute.xlu0 %315
        %319 = vset.pattern.permute.xlu0 0
        %320 = vperm.xlu0 %319, %v306
        %v321 = vpop.permute.xlu0 %320
        %324 = vset.pattern.permute.xlu0 0
        %325 = vperm.xlu0 %324, %v311
        %v326 = vpop.permute.xlu0 %325
        %329 = vset.pattern.permute.xlu0 0
        %330 = vperm.xlu0 %329, %v312
        %v331 = vpop.permute.xlu0 %330
        %v334 = vlaneseq
        %v335 = vshrl.u32 %v334, 7
        %v336 = vsub.s32 0, %v335
        %v337 = vrot.slane %v304, %v336
        %v338 = vlaneseq
        %v339 = vshrl.u32 %v338, 7
        %v340 = vsub.s32 4, %v339
        %v341 = vrot.slane %v304, %v340
        %v344 = vlaneseq
        %v345 = vshrl.u32 %v344, 7
        %v346 = vsub.s32 0, %v345
        %v347 = vrot.slane %v337, %v346
        %v348 = vlaneseq
        %v349 = vshrl.u32 %v348, 7
        %v350 = vsub.s32 0, %v349
        %v351 = vrot.slane %v341, %v350
        %v352 = vmul.f32 %v326, %v347
        %v353 = vmul.f32 %v326, %v351
        %v354 = vmul.f32 %v331, %v347
        %v355 = vmul.f32 %v331, %v351
        %v356 = vadd.f32 %v316, %v352
        %v357 = vadd.f32 %v316, %v353
        %v358 = vadd.f32 %v321, %v354
        %v359 = vadd.f32 %v321, %v355
        %360 = vset.pattern.permute.xlu0 1
        %361 = vperm.xlu0 %360, %v311
        %v362 = vpop.permute.xlu0 %361
        %364 = vset.pattern.permute.xlu0 1
        %365 = vperm.xlu0 %364, %v312
        %v366 = vpop.permute.xlu0 %365
        %v368 = vlaneseq
        %v369 = vshrl.u32 %v368, 7
        %v370 = vsub.s32 1, %v369
        %v371 = vrot.slane %v304, %v370
        %v372 = vlaneseq
        %v373 = vshrl.u32 %v372, 7
        %v374 = vsub.s32 5, %v373
        %v375 = vrot.slane %v304, %v374
        %v378 = vlaneseq
        %v379 = vshrl.u32 %v378, 7
        %v380 = vsub.s32 1, %v379
        %v381 = vrot.slane %v371, %v380
        %v382 = vlaneseq
        %v383 = vshrl.u32 %v382, 7
        %v384 = vsub.s32 1, %v383
        %v385 = vrot.slane %v375, %v384
        %v386 = vmul.f32 %v362, %v381
        %v387 = vmul.f32 %v362, %v385
        %v388 = vmul.f32 %v366, %v381
        %v389 = vmul.f32 %v366, %v385
        %v390 = vadd.f32 %v356, %v386
        %v391 = vadd.f32 %v357, %v387
        %v392 = vadd.f32 %v358, %v388
        %v393 = vadd.f32 %v359, %v389
        %394 = vset.pattern.permute.xlu0 2
        %395 = vperm.xlu0 %394, %v311
        %v396 = vpop.permute.xlu0 %395
        %398 = vset.pattern.permute.xlu0 2
        %399 = vperm.xlu0 %398, %v312
        %v400 = vpop.permute.xlu0 %399
        %v402 = vlaneseq
        %v403 = vshrl.u32 %v402, 7
        %v404 = vsub.s32 2, %v403
        %v405 = vrot.slane %v304, %v404
        %v406 = vlaneseq
        %v407 = vshrl.u32 %v406, 7
        %v408 = vsub.s32 6, %v407
        %v409 = vrot.slane %v304, %v408
        %v412 = vlaneseq
        %v413 = vshrl.u32 %v412, 7
        %v414 = vsub.s32 2, %v413
        %v415 = vrot.slane %v405, %v414
        %v416 = vlaneseq
        %v417 = vshrl.u32 %v416, 7
        %v418 = vsub.s32 2, %v417
        %v419 = vrot.slane %v409, %v418
        %v420 = vmul.f32 %v396, %v415
        %v421 = vmul.f32 %v396, %v419
        %v422 = vmul.f32 %v400, %v415
        %v423 = vmul.f32 %v400, %v419
        %v424 = vadd.f32 %v390, %v420
        %v425 = vadd.f32 %v391, %v421
        %v426 = vadd.f32 %v392, %v422
        %v427 = vadd.f32 %v393, %v423
        %428 = vset.pattern.permute.xlu0 3
        %429 = vperm.xlu0 %428, %v311
        %v430 = vpop.permute.xlu0 %429
        %432 = vset.pattern.permute.xlu0 3
        %433 = vperm.xlu0 %432, %v312
        %v434 = vpop.permute.xlu0 %433
        %v436 = vlaneseq
        %v437 = vshrl.u32 %v436, 7
        %v438 = vsub.s32 3, %v437
        %v439 = vrot.slane %v304, %v438
        %v440 = vlaneseq
        %v441 = vshrl.u32 %v440, 7
        %v442 = vsub.s32 7, %v441
        %v443 = vrot.slane %v304, %v442
        %v446 = vlaneseq
        %v447 = vshrl.u32 %v446, 7
        %v448 = vsub.s32 3, %v447
        %v449 = vrot.slane %v439, %v448
        %v450 = vlaneseq
        %v451 = vshrl.u32 %v450, 7
        %v452 = vsub.s32 3, %v451
        %v453 = vrot.slane %v443, %v452
        %v454 = vmul.f32 %v430, %v449
        %v455 = vmul.f32 %v430, %v453
        %v456 = vmul.f32 %v434, %v449
        %v457 = vmul.f32 %v434, %v453
        %v458 = vadd.f32 %v424, %v454
        %v459 = vadd.f32 %v425, %v455
        %v460 = vadd.f32 %v426, %v456
        %v461 = vadd.f32 %v427, %v457
        %v462 = vld [vmem:[%s3] sm:$0xff]
        %v463 = vld [vmem:[%s3 + $0x8] sm:$0xff]
        %465 = vset.pattern.permute.xlu0 0
        %466 = vperm.xlu0 %465, %v307
        %v467 = vpop.permute.xlu0 %466
        %470 = vset.pattern.permute.xlu0 0
        %471 = vperm.xlu0 %470, %v308
        %v472 = vpop.permute.xlu0 %471
        %474 = vrot.lane.b32.xlu0 %v458, 16
        %v475 = vpop.permute.xlu0 %474
        %476 = vrot.lane.b32.xlu0 %v460, 16
        %v477 = vpop.permute.xlu0 %476
        %478 = vrot.lane.b32.xlu0 %v459, 16
        %v479 = vpop.permute.xlu0 %478
        %480 = vrot.lane.b32.xlu0 %v461, 16
        %v481 = vpop.permute.xlu0 %480
        %v482 = vlaneseq
        %v483 = vand.u32 %v482, 127
        %vm484 = vcmp.lt.s32.totalorder %v483, 16
        %v485 = vsel %vm484, %v475, %v479
        %v486 = vsel %vm484, %v477, %v481
        %v487 = vsel %vm484, %v479, %v475
        %v488 = vsel %vm484, %v481, %v477
        %v490 = vlaneseq
        %v491 = vshrl.u32 %v490, 7
        %v492 = vsub.s32 0, %v491
        %v493 = vrot.slane %v310, %v492
        %v494 = vlaneseq
        %v495 = vshrl.u32 %v494, 7
        %v496 = vsub.s32 4, %v495
        %v497 = vrot.slane %v310, %v496
        %v500 = vlaneseq
        %v501 = vshrl.u32 %v500, 7
        %v502 = vsub.s32 0, %v501
        %v503 = vrot.slane %v493, %v502
        %v504 = vlaneseq
        %v505 = vshrl.u32 %v504, 7
        %v506 = vsub.s32 0, %v505
        %v507 = vrot.slane %v497, %v506
        %v508 = vmul.f32 %v487, %v503
        %v509 = vmul.f32 %v485, %v507
        %v510 = vmul.f32 %v488, %v503
        %v511 = vmul.f32 %v486, %v507
        %512 = vrot.lane.b32.xlu0 %v508, 1
        %v513 = vpop.permute.xlu0 %512
        %514 = vrot.lane.b32.xlu0 %v510, 1
        %v515 = vpop.permute.xlu0 %514
        %516 = vrot.lane.b32.xlu0 %v509, 1
        %v517 = vpop.permute.xlu0 %516
        %518 = vrot.lane.b32.xlu0 %v511, 1
        %v519 = vpop.permute.xlu0 %518
        %vm520 = vcmp.lt.s32.totalorder %v483, 1
        %v521 = vsel %vm520, %v513, %v517
        %v522 = vsel %vm520, %v515, %v519
        %v523 = vsel %vm520, %v517, %v513
        %v524 = vsel %vm520, %v519, %v515
        %v525 = vlaneseq
        %v526 = vshrl.u32 %v525, 7
        %v527 = vsub.s32 2, %v526
        %v528 = vrot.slane %v310, %v527
        %v529 = vlaneseq
        %v530 = vshrl.u32 %v529, 7
        %v531 = vsub.s32 6, %v530
        %v532 = vrot.slane %v310, %v531
        %v535 = vlaneseq
        %v536 = vshrl.u32 %v535, 7
        %v537 = vsub.s32 2, %v536
        %v538 = vrot.slane %v528, %v537
        %v539 = vlaneseq
        %v540 = vshrl.u32 %v539, 7
        %v541 = vsub.s32 2, %v540
        %v542 = vrot.slane %v532, %v541
        %v543 = vmul.f32 %v523, %v538
        %v544 = vmul.f32 %v521, %v542
        %v545 = vmul.f32 %v524, %v538
        %v546 = vmul.f32 %v522, %v542
        %548 = vset.pattern.permute.xlu0 0
        %549 = vperm.xlu0 %548, %v462
        %v550 = vpop.permute.xlu0 %549
        %553 = vset.pattern.permute.xlu0 0
        %554 = vperm.xlu0 %553, %v463
        %v555 = vpop.permute.xlu0 %554
        %v557 = vmul.f32 %v550, %v543
        %v558 = vmul.f32 %v550, %v544
        %v559 = vmul.f32 %v555, %v545
        %v560 = vmul.f32 %v555, %v546
        %v561 = vadd.f32 %v467, %v557
        %v562 = vadd.f32 %v467, %v558
        %v563 = vadd.f32 %v472, %v559
        %v564 = vadd.f32 %v472, %v560
        %565 = vset.pattern.permute.xlu0 1
        %566 = vperm.xlu0 %565, %v462
        %v567 = vpop.permute.xlu0 %566
        %569 = vset.pattern.permute.xlu0 1
        %570 = vperm.xlu0 %569, %v463
        %v571 = vpop.permute.xlu0 %570
        %v573 = vmul.f32 %v567, %v508
        %v574 = vmul.f32 %v567, %v509
        %v575 = vmul.f32 %v571, %v510
        %v576 = vmul.f32 %v571, %v511
        %v577 = vadd.f32 %v561, %v573
        %v578 = vadd.f32 %v562, %v574
        %v579 = vadd.f32 %v563, %v575
        %v580 = vadd.f32 %v564, %v576
        %581 = vrot.lane.b32.xlu0 %v508, 127
        %v582 = vpop.permute.xlu0 %581
        %583 = vrot.lane.b32.xlu0 %v510, 127
        %v584 = vpop.permute.xlu0 %583
        %585 = vrot.lane.b32.xlu0 %v509, 127
        %v586 = vpop.permute.xlu0 %585
        %587 = vrot.lane.b32.xlu0 %v511, 127
        %v588 = vpop.permute.xlu0 %587
        %vm589 = vcmp.lt.s32.totalorder %v483, 127
        %v590 = vsel %vm589, %v582, %v586
        %v591 = vsel %vm589, %v584, %v588
        %v592 = vsel %vm589, %v586, %v582
        %v593 = vsel %vm589, %v588, %v584
        %v594 = vlaneseq
        %v595 = vshrl.u32 %v594, 7
        %v596 = vsub.s32 3, %v595
        %v597 = vrot.slane %v310, %v596
        %v598 = vlaneseq
        %v599 = vshrl.u32 %v598, 7
        %v600 = vsub.s32 7, %v599
        %v601 = vrot.slane %v310, %v600
        %v604 = vlaneseq
        %v605 = vshrl.u32 %v604, 7
        %v606 = vsub.s32 3, %v605
        %v607 = vrot.slane %v597, %v606
        %v608 = vlaneseq
        %v609 = vshrl.u32 %v608, 7
        %v610 = vsub.s32 3, %v609
        %v611 = vrot.slane %v601, %v610
        %v612 = vmul.f32 %v590, %v607
        %v613 = vmul.f32 %v592, %v611
        %v614 = vmul.f32 %v591, %v607
        %v615 = vmul.f32 %v593, %v611
        %616 = vset.pattern.permute.xlu0 2
        %617 = vperm.xlu0 %616, %v462
        %v618 = vpop.permute.xlu0 %617
        %620 = vset.pattern.permute.xlu0 2
        %621 = vperm.xlu0 %620, %v463
        %v622 = vpop.permute.xlu0 %621
        %v624 = vmul.f32 %v618, %v612
        %v625 = vmul.f32 %v618, %v613
        %v626 = vmul.f32 %v622, %v614
        %v627 = vmul.f32 %v622, %v615
        %v628 = vadd.f32 %v577, %v624
        %v629 = vadd.f32 %v578, %v625
        %v630 = vadd.f32 %v579, %v626
        %v631 = vadd.f32 %v580, %v627
        %632 = vrot.lane.b32.xlu0 %v458, 1
        %v633 = vpop.permute.xlu0 %632
        %634 = vrot.lane.b32.xlu0 %v460, 1
        %v635 = vpop.permute.xlu0 %634
        %636 = vrot.lane.b32.xlu0 %v459, 1
        %v637 = vpop.permute.xlu0 %636
        %638 = vrot.lane.b32.xlu0 %v461, 1
        %v639 = vpop.permute.xlu0 %638
        %v640 = vsel %vm520, %v633, %v637
        %v641 = vsel %vm520, %v635, %v639
        %v642 = vsel %vm520, %v637, %v633
        %v643 = vsel %vm520, %v639, %v635
        %v644 = vmul.f32 %v642, %v538
        %v645 = vmul.f32 %v640, %v542
        %v646 = vmul.f32 %v643, %v538
        %v647 = vmul.f32 %v641, %v542
        %648 = vset.pattern.permute.xlu0 3
        %649 = vperm.xlu0 %648, %v462
        %v650 = vpop.permute.xlu0 %649
        %652 = vset.pattern.permute.xlu0 3
        %653 = vperm.xlu0 %652, %v463
        %v654 = vpop.permute.xlu0 %653
        %v656 = vmul.f32 %v650, %v644
        %v657 = vmul.f32 %v650, %v645
        %v658 = vmul.f32 %v654, %v646
        %v659 = vmul.f32 %v654, %v647
        %v660 = vadd.f32 %v628, %v656
        %v661 = vadd.f32 %v629, %v657
        %v662 = vadd.f32 %v630, %v658
        %v663 = vadd.f32 %v631, %v659
        %664 = vset.pattern.permute.xlu0 4
        %665 = vperm.xlu0 %664, %v462
        %v666 = vpop.permute.xlu0 %665
        %668 = vset.pattern.permute.xlu0 4
        %669 = vperm.xlu0 %668, %v463
        %v670 = vpop.permute.xlu0 %669
        %v672 = vmul.f32 %v666, %v458
        %v673 = vmul.f32 %v666, %v459
        %v674 = vmul.f32 %v670, %v460
        %v675 = vmul.f32 %v670, %v461
        %v676 = vadd.f32 %v660, %v672
        %v677 = vadd.f32 %v661, %v673
        %v678 = vadd.f32 %v662, %v674
        %v679 = vadd.f32 %v663, %v675
        %680 = vrot.lane.b32.xlu0 %v458, 127
        %v681 = vpop.permute.xlu0 %680
        %682 = vrot.lane.b32.xlu0 %v460, 127
        %v683 = vpop.permute.xlu0 %682
        %684 = vrot.lane.b32.xlu0 %v459, 127
        %v685 = vpop.permute.xlu0 %684
        %686 = vrot.lane.b32.xlu0 %v461, 127
        %v687 = vpop.permute.xlu0 %686
        %v688 = vsel %vm589, %v681, %v685
        %v689 = vsel %vm589, %v683, %v687
        %v690 = vsel %vm589, %v685, %v681
        %v691 = vsel %vm589, %v687, %v683
        %v692 = vmul.f32 %v688, %v607
        %v693 = vmul.f32 %v690, %v611
        %v694 = vmul.f32 %v689, %v607
        %v695 = vmul.f32 %v691, %v611
        %696 = vset.pattern.permute.xlu0 5
        %697 = vperm.xlu0 %696, %v462
        %v698 = vpop.permute.xlu0 %697
        %700 = vset.pattern.permute.xlu0 5
        %701 = vperm.xlu0 %700, %v463
        %v702 = vpop.permute.xlu0 %701
        %v704 = vmul.f32 %v698, %v692
        %v705 = vmul.f32 %v698, %v693
        %v706 = vmul.f32 %v702, %v694
        %v707 = vmul.f32 %v702, %v695
        %v708 = vadd.f32 %v676, %v704
        %v709 = vadd.f32 %v677, %v705
        %v710 = vadd.f32 %v678, %v706
        %v711 = vadd.f32 %v679, %v707
        %712 = vrot.lane.b32.xlu0 %v458, 112
        %v713 = vpop.permute.xlu0 %712
        %714 = vrot.lane.b32.xlu0 %v460, 112
        %v715 = vpop.permute.xlu0 %714
        %716 = vrot.lane.b32.xlu0 %v459, 112
        %v717 = vpop.permute.xlu0 %716
        %718 = vrot.lane.b32.xlu0 %v461, 112
        %v719 = vpop.permute.xlu0 %718
        %vm720 = vcmp.lt.s32.totalorder %v483, 112
        %v721 = vsel %vm720, %v713, %v717
        %v722 = vsel %vm720, %v715, %v719
        %v723 = vsel %vm720, %v717, %v713
        %v724 = vsel %vm720, %v719, %v715
        %v725 = vlaneseq
        %v726 = vshrl.u32 %v725, 7
        %v727 = vsub.s32 1, %v726
        %v728 = vrot.slane %v310, %v727
        %v729 = vlaneseq
        %v730 = vshrl.u32 %v729, 7
        %v731 = vsub.s32 5, %v730
        %v732 = vrot.slane %v310, %v731
        %v735 = vlaneseq
        %v736 = vshrl.u32 %v735, 7
        %v737 = vsub.s32 1, %v736
        %v738 = vrot.slane %v728, %v737
        %v739 = vlaneseq
        %v740 = vshrl.u32 %v739, 7
        %v741 = vsub.s32 1, %v740
        %v742 = vrot.slane %v732, %v741
        %v743 = vmul.f32 %v721, %v738
        %v744 = vmul.f32 %v723, %v742
        %v745 = vmul.f32 %v722, %v738
        %v746 = vmul.f32 %v724, %v742
        %747 = vrot.lane.b32.xlu0 %v743, 1
        %v748 = vpop.permute.xlu0 %747
        %749 = vrot.lane.b32.xlu0 %v745, 1
        %v750 = vpop.permute.xlu0 %749
        %751 = vrot.lane.b32.xlu0 %v744, 1
        %v752 = vpop.permute.xlu0 %751
        %753 = vrot.lane.b32.xlu0 %v746, 1
        %v754 = vpop.permute.xlu0 %753
        %v755 = vsel %vm520, %v748, %v752
        %v756 = vsel %vm520, %v750, %v754
        %v757 = vsel %vm520, %v752, %v748
        %v758 = vsel %vm520, %v754, %v750
        %v759 = vmul.f32 %v757, %v538
        %v760 = vmul.f32 %v755, %v542
        %v761 = vmul.f32 %v758, %v538
        %v762 = vmul.f32 %v756, %v542
        %763 = vset.pattern.permute.xlu0 6
        %764 = vperm.xlu0 %763, %v462
        %v765 = vpop.permute.xlu0 %764
        %767 = vset.pattern.permute.xlu0 6
        %768 = vperm.xlu0 %767, %v463
        %v769 = vpop.permute.xlu0 %768
        %v771 = vmul.f32 %v765, %v759
        %v772 = vmul.f32 %v765, %v760
        %v773 = vmul.f32 %v769, %v761
        %v774 = vmul.f32 %v769, %v762
        %v775 = vadd.f32 %v708, %v771
        %v776 = vadd.f32 %v709, %v772
        %v777 = vadd.f32 %v710, %v773
        %v778 = vadd.f32 %v711, %v774
        %779 = vset.pattern.permute.xlu0 7
        %780 = vperm.xlu0 %779, %v462
        %v781 = vpop.permute.xlu0 %780
        %783 = vset.pattern.permute.xlu0 7
        %784 = vperm.xlu0 %783, %v463
        %v785 = vpop.permute.xlu0 %784
        %v787 = vmul.f32 %v781, %v743
        %v788 = vmul.f32 %v781, %v744
        %v789 = vmul.f32 %v785, %v745
        %v790 = vmul.f32 %v785, %v746
        %v791 = vadd.f32 %v775, %v787
        %v792 = vadd.f32 %v776, %v788
        %v793 = vadd.f32 %v777, %v789
        %v794 = vadd.f32 %v778, %v790
        %795 = vrot.lane.b32.xlu0 %v743, 127
        %v796 = vpop.permute.xlu0 %795
        %797 = vrot.lane.b32.xlu0 %v745, 127
        %v798 = vpop.permute.xlu0 %797
        %799 = vrot.lane.b32.xlu0 %v744, 127
        %v800 = vpop.permute.xlu0 %799
        %801 = vrot.lane.b32.xlu0 %v746, 127
        %v802 = vpop.permute.xlu0 %801
        %v803 = vsel %vm589, %v796, %v800
        %v804 = vsel %vm589, %v798, %v802
        %v805 = vsel %vm589, %v800, %v796
        %v806 = vsel %vm589, %v802, %v798
        %v807 = vmul.f32 %v803, %v607
        %v808 = vmul.f32 %v805, %v611
        %v809 = vmul.f32 %v804, %v607
        %v810 = vmul.f32 %v806, %v611
        %811 = vset.pattern.permute.xlu0 8
        %812 = vperm.xlu0 %811, %v462
        %v813 = vpop.permute.xlu0 %812
        %815 = vset.pattern.permute.xlu0 8
        %816 = vperm.xlu0 %815, %v463
        %v817 = vpop.permute.xlu0 %816
        %v819 = vmul.f32 %v813, %v807
        %v820 = vmul.f32 %v813, %v808
        %v821 = vmul.f32 %v817, %v809
        %v822 = vmul.f32 %v817, %v810
        %v823 = vadd.f32 %v791, %v819
        %v824 = vadd.f32 %v792, %v820
        %v825 = vadd.f32 %v793, %v821
        %v826 = vadd.f32 %v794, %v822
        %v827 = vmul.f32 %v823, 0.5
        %v828 = vmul.f32 %v824, 0.5
        %v829 = vmul.f32 %v823, 0.70710677
        %v830 = vmul.f32 %v824, 0.70710677
        %v831 = vand.u32 2147483647, %v829
        %v832 = vand.u32 2147483647, %v830
        %v833 = vmul.f32 %v831, 0.3275911
        %v834 = vmul.f32 %v832, 0.3275911
        %v835 = vadd.f32 %v833, 1.0
        %v836 = vadd.f32 %v834, 1.0
        %v837 = vrcp.pop %v835
        %v838 = vmul.f32 1.0, %v837
        %v839 = vrcp.pop %v836
        %v840 = vmul.f32 1.0, %v839
        %v841 = vmul.f32 %v838, 1.0614054
        %v842 = vmul.f32 %v840, 1.0614054
        %v843 = vadd.f32 %v841, -1.4531521
        %v844 = vadd.f32 %v842, -1.4531521
        %v845 = vmul.f32 %v843, %v838
        %v846 = vmul.f32 %v844, %v840
        %v847 = vadd.f32 %v845, 1.4214138
        %v848 = vadd.f32 %v846, 1.4214138
        %v849 = vmul.f32 %v847, %v838
        %v850 = vmul.f32 %v848, %v840
        %v851 = vadd.f32 %v849, -0.28449672
        %v852 = vadd.f32 %v850, -0.28449672
        %v853 = vmul.f32 %v851, %v838
        %v854 = vmul.f32 %v852, %v840
        %v855 = vadd.f32 %v853, 0.2548296
        %v856 = vadd.f32 %v854, 0.2548296
        %v857 = vmul.f32 %v855, %v838
        %v858 = vmul.f32 %v856, %v840
        %v859 = vsub.f32 0.0, %v831
        %v860 = vsub.f32 0.0, %v832
        %v861 = vmul.f32 %v859, %v831
        %v862 = vmul.f32 %v860, %v832
        %v863 = vmul.f32 %v861, 1.442695
        %v864 = vpow.pop %v863
        %v865 = vmul.f32 %v862, 1.442695
        %v866 = vpow.pop %v865
        %v867 = vmul.f32 %v857, %v864
        %v868 = vmul.f32 %v858, %v866
        %v869 = vsub.f32 1.0, %v867
        %v870 = vsub.f32 1.0, %v868
        %vm871 = vcmp.ge.f32.partialorder %v829, 0.0
        %vm872 = vcmp.ge.f32.partialorder %v830, 0.0
        %v873 = vsub.f32 0.0, %v869
        %v874 = vsub.f32 0.0, %v870
        %v875 = vsel %vm871, %v869, %v873
        %v876 = vsel %vm872, %v870, %v874
        %v877 = vadd.f32 %v875, 1.0
        %v878 = vadd.f32 %v876, 1.0
        %v879 = vmul.f32 %v827, %v877
        %v880 = vmul.f32 %v828, %v878
        %v881 = vmul.f32 %v879, %v825
        %v882 = vmul.f32 %v880, %v826
        %v883 = vld [vmem:[%s5] sm:$0xf]
        %885 = vset.pattern.permute.xlu0 0
        %886 = vperm.xlu0 %885, %v309
        %v887 = vpop.permute.xlu0 %886
        %890 = vset.pattern.permute.xlu0 0
        %891 = vperm.xlu0 %890, %v883
        %v892 = vpop.permute.xlu0 %891
        %v894 = vlaneseq
        %v895 = vshrl.u32 %v894, 7
        %v896 = vsub.s32 0, %v895
        %v897 = vrot.slane %v881, %v896
        %v898 = vlaneseq
        %v899 = vshrl.u32 %v898, 7
        %v900 = vsub.s32 0, %v899
        %v901 = vrot.slane %v882, %v900
        %v902 = vmul.f32 %v892, %v897
        %v903 = vmul.f32 %v892, %v901
        %v904 = vadd.f32 %v887, %v902
        %v905 = vadd.f32 %v887, %v903
        %906 = vset.pattern.permute.xlu0 1
        %907 = vperm.xlu0 %906, %v883
        %v908 = vpop.permute.xlu0 %907
        %v910 = vlaneseq
        %v911 = vshrl.u32 %v910, 7
        %v912 = vsub.s32 1, %v911
        %v913 = vrot.slane %v881, %v912
        %v914 = vlaneseq
        %v915 = vshrl.u32 %v914, 7
        %v916 = vsub.s32 1, %v915
        %v917 = vrot.slane %v882, %v916
        %v918 = vmul.f32 %v908, %v913
        %v919 = vmul.f32 %v908, %v917
        %v920 = vadd.f32 %v904, %v918
        %v921 = vadd.f32 %v905, %v919
        %922 = vset.pattern.permute.xlu0 2
        %923 = vperm.xlu0 %922, %v883
        %v924 = vpop.permute.xlu0 %923
        %v926 = vlaneseq
        %v927 = vshrl.u32 %v926, 7
        %v928 = vsub.s32 2, %v927
        %v929 = vrot.slane %v881, %v928
        %v930 = vlaneseq
        %v931 = vshrl.u32 %v930, 7
        %v932 = vsub.s32 2, %v931
        %v933 = vrot.slane %v882, %v932
        %v934 = vmul.f32 %v924, %v929
        %v935 = vmul.f32 %v924, %v933
        %v936 = vadd.f32 %v920, %v934
        %v937 = vadd.f32 %v921, %v935
        %938 = vset.pattern.permute.xlu0 3
        %939 = vperm.xlu0 %938, %v883
        %v940 = vpop.permute.xlu0 %939
        %v942 = vlaneseq
        %v943 = vshrl.u32 %v942, 7
        %v944 = vsub.s32 3, %v943
        %v945 = vrot.slane %v881, %v944
        %v946 = vlaneseq
        %v947 = vshrl.u32 %v946, 7
        %v948 = vsub.s32 3, %v947
        %v949 = vrot.slane %v882, %v948
        %v950 = vmul.f32 %v940, %v945
        %v951 = vmul.f32 %v940, %v949
        %v952 = vadd.f32 %v936, %v950
        %v953 = vadd.f32 %v937, %v951
        %954 = vset.pattern.permute.xlu0 4
        %955 = vperm.xlu0 %954, %v883
        %v956 = vpop.permute.xlu0 %955
        %v958 = vlaneseq
        %v959 = vshrl.u32 %v958, 7
        %v960 = vsub.s32 4, %v959
        %v961 = vrot.slane %v881, %v960
        %v962 = vlaneseq
        %v963 = vshrl.u32 %v962, 7
        %v964 = vsub.s32 4, %v963
        %v965 = vrot.slane %v882, %v964
        %v966 = vmul.f32 %v956, %v961
        %v967 = vmul.f32 %v956, %v965
        %v968 = vadd.f32 %v952, %v966
        %v969 = vadd.f32 %v953, %v967
        %970 = vset.pattern.permute.xlu0 5
        %971 = vperm.xlu0 %970, %v883
        %v972 = vpop.permute.xlu0 %971
        %v974 = vlaneseq
        %v975 = vshrl.u32 %v974, 7
        %v976 = vsub.s32 5, %v975
        %v977 = vrot.slane %v881, %v976
        %v978 = vlaneseq
        %v979 = vshrl.u32 %v978, 7
        %v980 = vsub.s32 5, %v979
        %v981 = vrot.slane %v882, %v980
        %v982 = vmul.f32 %v972, %v977
        %v983 = vmul.f32 %v972, %v981
        %v984 = vadd.f32 %v968, %v982
        %v985 = vadd.f32 %v969, %v983
        %986 = vset.pattern.permute.xlu0 6
        %987 = vperm.xlu0 %986, %v883
        %v988 = vpop.permute.xlu0 %987
        %v990 = vlaneseq
        %v991 = vshrl.u32 %v990, 7
        %v992 = vsub.s32 6, %v991
        %v993 = vrot.slane %v881, %v992
        %v994 = vlaneseq
        %v995 = vshrl.u32 %v994, 7
        %v996 = vsub.s32 6, %v995
        %v997 = vrot.slane %v882, %v996
        %v998 = vmul.f32 %v988, %v993
        %v999 = vmul.f32 %v988, %v997
        %v1000 = vadd.f32 %v984, %v998
        %v1001 = vadd.f32 %v985, %v999
        %1002 = vset.pattern.permute.xlu0 7
        %1003 = vperm.xlu0 %1002, %v883
        %v1004 = vpop.permute.xlu0 %1003
        %v1006 = vlaneseq
        %v1007 = vshrl.u32 %v1006, 7
        %v1008 = vsub.s32 7, %v1007
        %v1009 = vrot.slane %v881, %v1008
        %v1010 = vlaneseq
        %v1011 = vshrl.u32 %v1010, 7
        %v1012 = vsub.s32 7, %v1011
        %v1013 = vrot.slane %v882, %v1012
        %v1014 = vmul.f32 %v1004, %v1009
        %v1015 = vmul.f32 %v1004, %v1013
        %v1016 = vadd.f32 %v1000, %v1014
        %v1017 = vadd.f32 %v1001, %v1015
        %v1020 = vcombine.low %v1016, %v1017
        %1022 = vst [vmem:[%s298] sm:$0xff] %v1020
        %s1023 = sand.u32 %s203, 1
        %s1024 = scalar_lea.sflag [#allocation3], %s1023
        %s1025 = sand.u32 %s203, 1
        %s1026 = smul.addr %s1025, 8
        %s1027 = scalar_lea.vmem [#allocation2], %s1026
        // Predicated region
        $region53: #{tpu_custom_call.1} parent=51 // pred_check
          %p1028 = pneg %p213
        $region54: #{tpu_custom_call.1} parent=51 // pred_check_branch
          %1030 = sbr.rel (%p1028) target = $region56
        $region55: #{tpu_custom_call.1} parent=51 // pred_region
          %s1032 = ssub.s32 128, 128
          %1033 = vsyncadd %s1024, %s1032
          %s1034 = smul.addr %s22, 2
          %s1035 = smul.addr %s1034, 64
          %s1036 = scalar_lea.hbm %s8, %s1035
          %s1038 = sshll.u32 %s1027, 4
          %s1039 = int_to_ptr.vmem [resolvable:$true] %s1038
          %1041 = dma.vmem_to_hbm [thread:$0]  %s1039, 128, %s1036, %s1024
        $region56: #{tpu_custom_call.1} parent=51 // pred_fallthru
          _
      $region52: #{tpu_custom_call.1} parent=5 // pred_fallthru
        _
      %p1042 = scmp.le.s32.totalorder 2, %s17
      // Predicated region
      $region57: #{tpu_custom_call.1} parent=5 // pred_check
        %p1043 = pneg %p1042
      $region58: #{tpu_custom_call.1} parent=5 // pred_check_branch
        %1045 = sbr.rel (%p1043) target = $region60
      $region59: #{tpu_custom_call.1} parent=5 // pred_region
        %s1046 = ssub.s32 %s17, 2
        // Predicated region
        $region61: #{tpu_custom_call.1} parent=59 // pred_check
          %p1047 = pneg %p219
        $region62: #{tpu_custom_call.1} parent=59 // pred_check_branch
          %1049 = sbr.rel (%p1047) target = $region64
        $region63: #{tpu_custom_call.1} parent=59 // pred_region
          %s1050 = sand.u32 %s204, 1
          %s1051 = scalar_lea.sflag [#allocation3], %s1050
          %s1052 = sand.u32 %s204, 1
          %s1053 = smul.addr %s1052, 8
          %s1054 = scalar_lea.vmem [#allocation2], %s1053
          %1055 = dma.done %s1051, 128
        $region64: #{tpu_custom_call.1} parent=59 // pred_fallthru
          _
      $region60: #{tpu_custom_call.1} parent=5 // pred_fallthru
        _
    $region6: #{tpu_custom_call.1} parent=1 // loop_footer
      %s21 = sadd.s32 1, %s17
    $region7: #{tpu_custom_call.1} parent=1 // loop_footer_branch
      %16 = sbr.rel target = $region3
    $region8: #{tpu_custom_call.1} parent=1 // loop_exit
      _
    %1056 = vsyncpa [#allocation3], 1
    %s1057 = scalar_lea.sflag [#allocation3], 1
    %1058 = vsyncpa %s1057, 1

</llo_original>
